<compile_context>
chip_gen: v7x
topology: tpu7x:2x2x1
jax: 0.10.0
libtpu: 0.0.40
codegen_flags: <defaults>
</compile_context>

<pallas_src>
import functools

import jax
import jax.numpy as jnp
from jax.experimental import pallas as pl
from jax.experimental.pallas import tpu as pltpu


def _mean_kernel(x_ref, o_ref, acc_ref, *, r_total, r_block, mask_r):
    # x_ref:  (r_block, tile)   -- one chunk of the reduction axis
    # o_ref:  (1, tile)         -- output tile (resident across the r axis)
    # acc_ref:(1, tile) f32     -- running sum scratch
    r = pl.program_id(2)

    @pl.when(r == 0)
    def _():
        acc_ref[...] = jnp.zeros_like(acc_ref)

    x = x_ref[...].astype(jnp.float32)
    if mask_r:
        # Last R block may be partial; zero out rows past the end so padding
        # garbage never reaches the accumulator.
        row = jax.lax.broadcasted_iota(jnp.int32, x.shape, 0)
        x = jnp.where(row < (r_total - r * r_block), x, 0.0)

    acc_ref[...] += jnp.sum(x, axis=0, keepdims=True)

    @pl.when(r == pl.num_programs(2) - 1)
    def _():
        o_ref[...] = (acc_ref[...] * (1.0 / r_total)).astype(o_ref.dtype)


# Conservative budget for the double-buffered input block (fits comfortably in
# every generation's scoped VMEM, including v7x's 64 MiB physical / 32 MiB
# scoped default).
_VMEM_INPUT_BUDGET = 16 * 1024 * 1024
_R_BLOCK_CAP = 512  # multiple of both 8 (f32) and 16 (bf16 packed sublanes)


def global_average(x, axis=0):
    """Mean over `axis`, matching torch.Tensor.mean(axis=axis)."""
    x = jnp.asarray(x)
    ndim = x.ndim
    axis = axis % ndim
    shape = x.shape

    R = shape[axis]
    out_shape_final = shape[:axis] + shape[axis + 1:]

    outer = 1
    for d in shape[:axis]:
        outer *= d
    inner = 1
    for d in shape[axis + 1:]:
        inner *= d

    # Free reshape (contiguous row-major) -- no HBM transpose copy.
    x3 = x.reshape(outer, R, inner)

    # ---- R blocking (reduction axis streamed through the grid) ----
    if R <= _R_BLOCK_CAP:
        r_block = R          # full dim: always a legal block size
    else:
        r_block = _R_BLOCK_CAP
    mask_r = (R % r_block) != 0
    n_r = pl.cdiv(R, r_block)

    # ---- lane tiling over `inner` ----
    itemsize = jnp.dtype(x.dtype).itemsize
    if inner <= 128:
        # Full (possibly narrow) lane dim; legal even when not a multiple
        # of 128.  TODO(synk): lane-width < 128 stores are masked (slow) --
        # only hit for axis == last dim, not the module's default axis=0 use.
        tile = inner
    else:
        max_tile = _VMEM_INPUT_BUDGET // (2 * r_block * itemsize)
        max_tile = max(128, (max_tile // 128) * 128)
        tile = min(max_tile, pl.cdiv(inner, 128) * 128)
        if outer == 1 and inner >= 256:
            # Keep at least 2 lane blocks so both v7x TensorCores get work.
            half = max(128, (inner // 2) // 128 * 128)
            tile = min(tile, half)
    n_lane = pl.cdiv(inner, tile)

    grid = (outer, n_lane, n_r)

    kernel = functools.partial(
        _mean_kernel, r_total=R, r_block=r_block, mask_r=mask_r
    )

    out3 = pl.pallas_call(
        kernel,
        out_shape=jax.ShapeDtypeStruct((outer, 1, inner), x.dtype),
        grid_spec=pltpu.PrefetchScalarGridSpec(
            num_scalar_prefetch=0,
            grid=grid,
            in_specs=[
                pl.BlockSpec((None, r_block, tile), lambda o, j, r: (o, r, j)),
            ],
            out_specs=pl.BlockSpec((None, 1, tile), lambda o, j, r: (o, 0, j)),
            scratch_shapes=[pltpu.VMEM((1, tile), jnp.float32)],
        ),
        compiler_params=pltpu.CompilerParams(
            dimension_semantics=("parallel", "parallel", "arbitrary"),
            vmem_limit_bytes=32 * 1024 * 1024,
        ),
    )(x3)

    return out3.reshape(out_shape_final)


if __name__ == "__main__":
    key = jax.random.PRNGKey(0)
    # Small NCHW input consistent with the module's intended use.
    x = jax.random.normal(key, (2, 4, 16, 16), dtype=jnp.float32)

    # Default axis=0, like the module.
    out = global_average(x, axis=0)
    out = jax.block_until_ready(out)
    ref = jnp.mean(x, axis=0)
    assert out.shape == ref.shape == (4, 16, 16)
    assert jnp.allclose(out, ref, atol=1e-5, rtol=1e-5)

    # Sanity-check a non-default axis (no transposed HBM copy on this path).
    out1 = jax.block_until_ready(global_average(x, axis=1))
    ref1 = jnp.mean(x, axis=1)
    assert out1.shape == ref1.shape == (2, 16, 16)
    assert jnp.allclose(out1, ref1, atol=1e-5, rtol=1e-5)

    print("KERNEL_OK")
</pallas_src>

<mosaic_0001>
module attributes {stable_mosaic.version = 11 : i64} {
  func.func @_mean_kernel(%arg0: i32, %arg1: i32, %arg2: i32, %arg3: memref<1x2x512xf32, #tpu.memory_space<vmem>>, %arg4: memref<1x1x512xf32, #tpu.memory_space<vmem>>, %arg5: memref<1x512xf32, #tpu.memory_space<vmem>>) attributes {dimension_semantics = [#tpu.dimension_semantics<parallel>, #tpu.dimension_semantics<parallel>, #tpu.dimension_semantics<arbitrary>], iteration_bounds = array<i64: 1, 2, 1>, scalar_prefetch = 0 : i64, scratch_operands = 1 : i64, tpu.core_type = #tpu.core_type<tc>, window_params = [{transform_indices = @transform_0, window_bounds = array<i64: 1, 2, 512>}, {transform_indices = @transform_1, window_bounds = array<i64: 1, 1, 512>}]} {
    %c0_i32 = arith.constant 0 : i32
    %0 = arith.cmpi eq, %arg2, %c0_i32 : i32
    %1 = arith.extui %0 : i1 to i32
    %c0_i32_0 = arith.constant 0 : i32
    %2 = arith.cmpi ne, %1, %c0_i32_0 : i32
    scf.if %2 {
      %cst_9 = arith.constant 0.000000e+00 : f32
      %13 = vector.broadcast %cst_9 : f32 to vector<1x512xf32>
      %c0_10 = arith.constant 0 : index
      %c0_11 = arith.constant 0 : index
      %14 = vector.load %arg5[%c0_10, %c0_11] : memref<1x512xf32, #tpu.memory_space<vmem>>, vector<1x512xf32>
      tpu.vector_store %arg5[%c0_10, %c0_11], %13 {strides = array<i32>} : memref<1x512xf32, #tpu.memory_space<vmem>>, vector<1x512xf32>,
    } else {
    }
    %c0 = arith.constant 0 : index
    %c0_1 = arith.constant 0 : index
    %c0_2 = arith.constant 0 : index
    %3 = vector.load %arg3[%c0, %c0_1, %c0_2] : memref<1x2x512xf32, #tpu.memory_space<vmem>>, vector<1x2x512xf32>
    %4 = vector.shape_cast %3 : vector<1x2x512xf32> to vector<2x512xf32>
    %c0_3 = arith.constant 0 : index
    %c0_4 = arith.constant 0 : index
    %5 = vector.load %arg5[%c0_3, %c0_4] : memref<1x512xf32, #tpu.memory_space<vmem>>, vector<1x512xf32>
    %cst = arith.constant dense<0.000000e+00> : vector<512xf32>
    %6 = vector.multi_reduction <add>, %4, %cst [0] : vector<2x512xf32> to vector<512xf32>
    %7 = vector.shape_cast %6 : vector<512xf32> to vector<1x512xf32>
    %8 = arith.addf %5, %7 : vector<1x512xf32>
    %c0_5 = arith.constant 0 : index
    %c0_6 = arith.constant 0 : index
    %9 = vector.load %arg5[%c0_5, %c0_6] : memref<1x512xf32, #tpu.memory_space<vmem>>, vector<1x512xf32>
    tpu.vector_store %arg5[%c0_5, %c0_6], %8 {strides = array<i32>} : memref<1x512xf32, #tpu.memory_space<vmem>>, vector<1x512xf32>,
    %c0_i32_7 = arith.constant 0 : i32
    %10 = arith.cmpi eq, %arg2, %c0_i32_7 : i32
    %11 = arith.extui %10 : i1 to i32
    %c0_i32_8 = arith.constant 0 : i32
    %12 = arith.cmpi ne, %11, %c0_i32_8 : i32
    scf.if %12 {
      %c0_9 = arith.constant 0 : index
      %c0_10 = arith.constant 0 : index
      %13 = vector.load %arg5[%c0_9, %c0_10] : memref<1x512xf32, #tpu.memory_space<vmem>>, vector<1x512xf32>
      %cst_11 = arith.constant 5.000000e-01 : f32
      %14 = vector.broadcast %cst_11 : f32 to vector<1x512xf32>
      %15 = arith.mulf %13, %14 : vector<1x512xf32>
      %c0_12 = arith.constant 0 : index
      %c0_13 = arith.constant 0 : index
      %c0_14 = arith.constant 0 : index
      %16 = vector.load %arg4[%c0_12, %c0_13, %c0_14] : memref<1x1x512xf32, #tpu.memory_space<vmem>>, vector<1x1x512xf32>
      %17 = vector.shape_cast %16 : vector<1x1x512xf32> to vector<1x512xf32>
      %18 = vector.shape_cast %15 : vector<1x512xf32> to vector<1x1x512xf32>
      tpu.vector_store %arg4[%c0_12, %c0_13, %c0_14], %18 {strides = array<i32>} : memref<1x1x512xf32, #tpu.memory_space<vmem>>, vector<1x1x512xf32>,
    } else {
    }
    return
  }
  func.func @transform_0(%arg0: i32, %arg1: i32, %arg2: i32) -> (i32, i32, i32) {
    %c0_i32 = arith.constant 0 : i32
    return %arg0, %arg2, %arg1 : i32, i32, i32
  }
  func.func @transform_1(%arg0: i32, %arg1: i32, %arg2: i32) -> (i32, i32, i32) {
    %c0_i32 = arith.constant 0 : i32
    %c0_i32_0 = arith.constant 0 : i32
    return %arg0, %c0_i32, %arg1 : i32, i32, i32
  }
}

</mosaic_0001>

<llo_original>
// kernel: tpu_custom_call.1
$region0: #{tpu_custom_call.1}
  #allocation0 [shape = 'u32[]', space=smem, size = 0x4, offset = 0x4, fixed_abs, tag = 'smem constant byte address 0x4 - core index']
  #allocation1 [shape = 'u32[144,128]{1,0:T(1,128)}', space=vmem, size = 0x12000, scoped, tag = 'internal scratch']
  #allocation2 [shape = 'f32[1,512]{1,0:T(1,128)}', space=vmem, size = 0x800, scoped, tag = 'scratch operand']
  %s0 = inlined_call_operand.hbm [shape: f32[1,2,1024], index: 0, kind: input, shape index: {}]
  %s1 = inlined_call_operand.hbm [shape: f32[1,1,1024], index: 1, kind: output, shape index: {}]
  %s2 = sld [smem:[#allocation0]]
  $region49: #{tpu_custom_call.1} parent=0
    _
  %s4 = ssub.s32 1, %s2
  %s5 = scalar_select 0, %s4, %s2
  $region1: #{tpu_custom_call.1} parent=0
    #allocation3 [shape = 'u8[8192]{0}', space=vmem, size = 0x2000, scoped, tag = 'input window, operand 0']
    #allocation4 [shape = 's32[2]{0}', space=sflag, size = 0x8, scoped, tag = 'scoped memory for tpu_custom_call.1']
    #allocation5 [shape = 's32[2]{0}', space=sflag, size = 0x8, scoped, tag = 'scoped memory for tpu_custom_call.1']
    #allocation6 [shape = 'u8[4096]{0}', space=vmem, size = 0x1000, scoped, tag = 'output window, operand 0']
    %6 = vsyncpa [#allocation4], 0
    %s7 = scalar_lea.sflag [#allocation4], 1
    %8 = vsyncpa %s7, 0
    %9 = vsyncpa [#allocation5], 0
    %s10 = scalar_lea.sflag [#allocation5], 1
    %11 = vsyncpa %s10, 0
    loop: start=0, step=1, limit=4
    $region2: #{tpu_custom_call.1} parent=1 // loop_pre_header
      _
    $region3: #{tpu_custom_call.1} parent=1 // loop_header
      %s13 = sphi 0, %s17
      %p14 = scmp.ge.s32.totalorder %s13, 4
      %s20 = sphi 0, %s39
      %s21 = sphi 0, %s35
      %s22 = sphi 0, %s31
      %s23 = sphi 0, %s20
      %s24 = sphi 0, %s21
      %s25 = sphi 0, %s22
      %s26 = sphi 0, %s23
      %s27 = sphi 0, %s24
      %s28 = sphi 0, %s25
      %s46 = sphi 0, %s48
      %s49 = sphi 0, %s46
      %s50 = sphi 0, %s49
      %s66 = sphi 0, %s50
      %s74 = sphi 0, %s76
      %s77 = sphi 0, %s74
      %s78 = sphi 0, %s77
      %s94 = sphi 0, %s78
    $region4: #{tpu_custom_call.1} parent=1 // loop_header_branch
      %16 = sbr.rel (%p14) target = $region8
    $region5: #{tpu_custom_call.1} parent=1 // loop_body
      %s18 = ssub.s32 %s13, 1
      %s19 = ssub.s32 %s13, 2
      %s29 = sadd.s32 1, %s22
      %p30 = scmp.ge.s32.totalorder %s29, 1
      %s31 = scalar_select %p30, 0, %s29
      %s32 = sadd.s32 1, %s21
      %s33 = scalar_select %p30, %s32, %s21
      %p34 = scmp.ge.s32.totalorder %s33, 2
      %s35 = scalar_select %p34, 0, %s33
      %s36 = sadd.s32 1, %s20
      %s37 = scalar_select %p34, %s36, %s20
      %p38 = scmp.ge.s32.totalorder %s37, 1
      %s39 = scalar_select %p38, 0, %s37
      %s40 = ssub.s32 %s20, %s39
      %s41 = ssub.s32 %s22, %s31
      %s42 = sor.u32 %s40, %s41
      %s43 = ssub.s32 %s21, %s35
      %s44 = sor.u32 %s42, %s43
      %p45 = scmp.eq.s32.totalorder %s44, 0
      %s47 = sadd.s32 %s46, 1
      %s48 = scalar_select %p45, %s46, %s47
      %p51 = pneg %p45
      %p52 = scmp.eq.s32.totalorder %s13, 1
      %p53 = por %p51, %p52
      %p54 = scmp.ne.s32.totalorder %s46, %s49
      %p55 = scmp.eq.s32.totalorder %s13, 0
      %p56 = por %p54, %p55
      %p57 = scmp.ne.s32.totalorder %s46, %s49
      %p58 = scmp.eq.s32.totalorder %s18, 1
      %p59 = por %p57, %p58
      %p60 = scmp.ne.s32.totalorder %s49, %s50
      %p61 = scmp.eq.s32.totalorder %s18, 0
      %p62 = por %p60, %p61
      %p63 = scmp.ne.s32.totalorder %s49, %s50
      %p64 = scmp.eq.s32.totalorder %s19, 1
      %p65 = por %p63, %p64
      %p67 = scmp.ne.s32.totalorder %s50, %s66
      %p68 = scmp.eq.s32.totalorder %s19, 0
      %p69 = por %p67, %p68
      %s70 = ssub.s32 %s20, %s39
      %s71 = ssub.s32 %s21, %s35
      %s72 = sor.u32 %s70, %s71
      %p73 = scmp.eq.s32.totalorder %s72, 0
      %s75 = sadd.s32 %s74, 1
      %s76 = scalar_select %p73, %s74, %s75
      %p79 = pneg %p73
      %p80 = scmp.eq.s32.totalorder %s13, 1
      %p81 = por %p79, %p80
      %p82 = scmp.ne.s32.totalorder %s74, %s77
      %p83 = scmp.eq.s32.totalorder %s13, 0
      %p84 = por %p82, %p83
      %p85 = scmp.ne.s32.totalorder %s74, %s77
      %p86 = scmp.eq.s32.totalorder %s18, 1
      %p87 = por %p85, %p86
      %p88 = scmp.ne.s32.totalorder %s77, %s78
      %p89 = scmp.eq.s32.totalorder %s18, 0
      %p90 = por %p88, %p89
      %p91 = scmp.ne.s32.totalorder %s77, %s78
      %p92 = scmp.eq.s32.totalorder %s19, 1
      %p93 = por %p91, %p92
      %p95 = scmp.ne.s32.totalorder %s78, %s94
      %p96 = scmp.eq.s32.totalorder %s19, 0
      %p97 = por %p95, %p96
      %p98 = scmp.le.s32.totalorder 1, %s13
      %p99 = scmp.lt.s32.totalorder %s13, 3
      %p100 = pnand %p98, %p99
      %p101 = pneg %p100
      // Predicated region
      $region9: #{tpu_custom_call.1} parent=5 // pred_check
        _
      $region10: #{tpu_custom_call.1} parent=5 // pred_check_branch
        %103 = sbr.rel (%p100) target = $region12
      $region11: #{tpu_custom_call.1} parent=5 // pred_region
        %s104 = ssub.s32 %s13, 1
      $region12: #{tpu_custom_call.1} parent=5 // pred_fallthru
        _
      %p105 = scmp.lt.s32.totalorder %s13, 2
      // Predicated region
      $region13: #{tpu_custom_call.1} parent=5 // pred_check
        %p106 = pneg %p105
      $region14: #{tpu_custom_call.1} parent=5 // pred_check_branch
        %108 = sbr.rel (%p106) target = $region16
      $region15: #{tpu_custom_call.1} parent=5 // pred_region
        // Predicated region
        $region17: #{tpu_custom_call.1} parent=15 // pred_check
          %p109 = pneg %p56
        $region18: #{tpu_custom_call.1} parent=15 // pred_check_branch
          %111 = sbr.rel (%p109) target = $region20
        $region19: #{tpu_custom_call.1} parent=15 // pred_region
          %s112 = sand.u32 %s46, 1
          %s113 = scalar_lea.sflag [#allocation4], %s112
          %s114 = sand.u32 %s46, 1
          %s115 = smul.addr %s114, 8
          %s116 = scalar_lea.vmem [#allocation3], %s115
          %s117 = smul.u32 4, %s21
          %s119 = ssub.s32 128, 128
          %120 = vsyncadd %s113, %s119
          %s121 = smul.addr %s22, 8
          %s122 = sadd.s32 %s117, %s121
          %s123 = smul.addr %s20, 8
          %s124 = sadd.s32 %s122, %s123
          %s125 = smul.addr %s124, 32
          %s126 = scalar_lea.hbm %s0, %s125
          %s128 = sshll.u32 %s116, 4
          %s129 = int_to_ptr.vmem [resolvable:$true] %s128
          %131 = dma.hbm_to_vmem [thread:$0]  %s126, 128, %s129, %s113
        $region20: #{tpu_custom_call.1} parent=15 // pred_fallthru
          _
      $region16: #{tpu_custom_call.1} parent=5 // pred_fallthru
        _
      %p132 = scmp.le.s32.totalorder 1, %s13
      %p133 = scmp.lt.s32.totalorder %s13, 3
      %p134 = pnand %p132, %p133
      %p135 = pneg %p134
      // Predicated region
      $region21: #{tpu_custom_call.1} parent=5 // pred_check
        _
      $region22: #{tpu_custom_call.1} parent=5 // pred_check_branch
        %137 = sbr.rel (%p134) target = $region24
      $region23: #{tpu_custom_call.1} parent=5 // pred_region
        %s138 = ssub.s32 %s13, 1
        %s139 = sand.u32 %s49, 1
        %s140 = scalar_lea.sflag [#allocation4], %s139
        %s141 = sand.u32 %s49, 1
        %s142 = smul.addr %s141, 8
        %s143 = scalar_lea.vmem [#allocation3], %s142
        // Predicated region
        $region25: #{tpu_custom_call.1} parent=23 // pred_check
          %p144 = pneg %p62
        $region26: #{tpu_custom_call.1} parent=23 // pred_check_branch
          %146 = sbr.rel (%p144) target = $region28
        $region27: #{tpu_custom_call.1} parent=23 // pred_region
          %147 = dma.done %s140, 128
        $region28: #{tpu_custom_call.1} parent=23 // pred_fallthru
          _
        %s148 = sand.u32 %s49, 1
        %s149 = scalar_lea.sflag [#allocation4], %s148
        %s150 = sand.u32 %s49, 1
        %s151 = smul.addr %s150, 8
        %s152 = scalar_lea.vmem [#allocation3], %s151
        %p153 = pneg %p62
        %p154 = pneg %p59
        %p155 = pneg %p90
        %p156 = pneg %p87
        %s157 = sand.u32 %s77, 1
        %s158 = scalar_lea.sflag [#allocation5], %s157
        %s159 = sand.u32 %s77, 1
        %s160 = smul.addr %s159, 4
        %s161 = scalar_lea.vmem [#allocation6], %s160
        %s162 = smul.u32 4, %s24
        %s163 = smul.u32 4, %s24
        %p164 = scmp.eq.s32.totalorder %s25, 0
        // Predicated region
        $region29: #{tpu_custom_call.1} parent=23 // pred_check
          %p165 = pneg %p164
        $region30: #{tpu_custom_call.1} parent=23 // pred_check_branch
          %167 = sbr.rel (%p165) target = $region32
        $region31: #{tpu_custom_call.1} parent=23 // pred_region
          %v168 = vlaneseq
          %vm169 = vcmp.ge.s32.totalorder %v168, 0
          %vm170 = vcmp.lt.s32.totalorder %v168, 512
          %vm171 = vmand %vm169, %vm170
          %172 = vst.msk [vmem:[#allocation2] sm:$0xf] %vm171, 0.0
        $region32: #{tpu_custom_call.1} parent=23 // pred_fallthru
          _
        %v173 = vld [vmem:[%s143] sm:$0xff]
        %v174 = vld [vmem:[#allocation2] sm:$0xf]
        %v176 = vcombine.high %v173, %v173
        %v178 = vunpack.c.l.s4 1983009808
        %v179 = vunpack.c.0.s8 %v178
        %v180 = vlaneseq
        %v181 = vshrl.u32 %v180, 7
        %v182 = vsub.s32 %v179, %v181
        %v183 = vrot.slane %v173, %v182
        %v185 = vunpack.c.l.s4 1983009808
        %v186 = vunpack.c.0.s8 %v185
        %v187 = vlaneseq
        %v188 = vshrl.u32 %v187, 7
        %v189 = vsub.s32 %v186, %v188
        %v190 = vrot.slane %v176, %v189
        %v191 = vcombine.high %v183, %v183
        %v192 = vcombine.high %v190, %v190
        %vm197 = vcmask 1041408
        %v198 = vsel %vm197, %v183, 0.0
        %v199 = vrot.slane %v198, 4
        %v200 = vadd.f32 %v198, %v199
        %v201 = vrot.slane %v200, 2
        %v202 = vadd.f32 %v200, %v201
        %v203 = vrot.slane %v202, 1
        %v204 = vadd.f32 %v202, %v203
        %v205 = vsel %vm197, %v191, 0.0
        %v206 = vrot.slane %v205, 4
        %v207 = vadd.f32 %v205, %v206
        %v208 = vrot.slane %v207, 2
        %v209 = vadd.f32 %v207, %v208
        %v210 = vrot.slane %v209, 1
        %v211 = vadd.f32 %v209, %v210
        %v212 = vsel %vm197, %v190, 0.0
        %v213 = vrot.slane %v212, 4
        %v214 = vadd.f32 %v212, %v213
        %v215 = vrot.slane %v214, 2
        %v216 = vadd.f32 %v214, %v215
        %v217 = vrot.slane %v216, 1
        %v218 = vadd.f32 %v216, %v217
        %v219 = vsel %vm197, %v192, 0.0
        %v220 = vrot.slane %v219, 4
        %v221 = vadd.f32 %v219, %v220
        %v222 = vrot.slane %v221, 2
        %v223 = vadd.f32 %v221, %v222
        %v224 = vrot.slane %v223, 1
        %v225 = vadd.f32 %v223, %v224
        %v230 = vcombine.low %v204, %v211
        %v231 = vcombine.low %v218, %v225
        %v233 = vunpack.c.l.s4 1966171168
        %v234 = vunpack.c.0.s8 %v233
        %v235 = vlaneseq
        %v236 = vshrl.u32 %v235, 7
        %v237 = vsub.s32 %v234, %v236
        %v238 = vrot.slane %v230, %v237
        %v240 = vunpack.c.l.s4 1966171168
        %v241 = vunpack.c.0.s8 %v240
        %v242 = vlaneseq
        %v243 = vshrl.u32 %v242, 7
        %v244 = vsub.s32 %v241, %v243
        %v245 = vrot.slane %v231, %v244
        %v246 = vcombine.low %v238, %v245
        %v248 = vunpack.c.l.s4 1966171168
        %v249 = vunpack.c.0.s8 %v248
        %v250 = vlaneseq
        %v251 = vshrl.u32 %v250, 7
        %v252 = vsub.s32 %v249, %v251
        %v253 = vrot.slane %v246, %v252
        %v255 = vadd.f32 %v174, %v253
        %v256 = vlaneseq
        %vm257 = vcmp.ge.s32.totalorder %v256, 0
        %vm258 = vcmp.lt.s32.totalorder %v256, 512
        %vm259 = vmand %vm257, %vm258
        %260 = vst.msk [vmem:[#allocation2] sm:$0xf] %vm259, %v255
        // Predicated region
        $region33: #{tpu_custom_call.1} parent=23 // pred_check
          %p261 = pneg %p164
        $region34: #{tpu_custom_call.1} parent=23 // pred_check_branch
          %263 = sbr.rel (%p261) target = $region36
        $region35: #{tpu_custom_call.1} parent=23 // pred_region
          %v264 = vld [vmem:[#allocation2] sm:$0xf]
          %v265 = vmul.f32 %v264, 0.5
          %266 = vst.msk [vmem:[%s161] sm:$0xf] %vm259, %v265
        $region36: #{tpu_custom_call.1} parent=23 // pred_fallthru
          _
        %s267 = sand.u32 %s77, 1
        %s268 = scalar_lea.sflag [#allocation5], %s267
        %s269 = sand.u32 %s77, 1
        %s270 = smul.addr %s269, 4
        %s271 = scalar_lea.vmem [#allocation6], %s270
        // Predicated region
        $region37: #{tpu_custom_call.1} parent=23 // pred_check
          %p272 = pneg %p87
        $region38: #{tpu_custom_call.1} parent=23 // pred_check_branch
          %274 = sbr.rel (%p272) target = $region40
        $region39: #{tpu_custom_call.1} parent=23 // pred_region
          %s275 = smul.u32 4, %s24
          %s277 = ssub.s32 64, 64
          %278 = vsyncadd %s268, %s277
          %s279 = smul.addr %s23, 8
          %s280 = sadd.s32 %s275, %s279
          %s281 = smul.addr %s280, 16
          %s282 = scalar_lea.hbm %s1, %s281
          %s284 = sshll.u32 %s271, 4
          %s285 = int_to_ptr.vmem [resolvable:$true] %s284
          %287 = dma.vmem_to_hbm [thread:$0]  %s285, 64, %s282, %s268
        $region40: #{tpu_custom_call.1} parent=23 // pred_fallthru
          _
      $region24: #{tpu_custom_call.1} parent=5 // pred_fallthru
        _
      %p288 = scmp.le.s32.totalorder 2, %s13
      // Predicated region
      $region41: #{tpu_custom_call.1} parent=5 // pred_check
        %p289 = pneg %p288
      $region42: #{tpu_custom_call.1} parent=5 // pred_check_branch
        %291 = sbr.rel (%p289) target = $region44
      $region43: #{tpu_custom_call.1} parent=5 // pred_region
        %s292 = ssub.s32 %s13, 2
        // Predicated region
        $region45: #{tpu_custom_call.1} parent=43 // pred_check
          %p293 = pneg %p93
        $region46: #{tpu_custom_call.1} parent=43 // pred_check_branch
          %295 = sbr.rel (%p293) target = $region48
        $region47: #{tpu_custom_call.1} parent=43 // pred_region
          %s296 = sand.u32 %s78, 1
          %s297 = scalar_lea.sflag [#allocation5], %s296
          %s298 = sand.u32 %s78, 1
          %s299 = smul.addr %s298, 4
          %s300 = scalar_lea.vmem [#allocation6], %s299
          %301 = dma.done %s297, 64
        $region48: #{tpu_custom_call.1} parent=43 // pred_fallthru
          _
      $region44: #{tpu_custom_call.1} parent=5 // pred_fallthru
        _
    $region6: #{tpu_custom_call.1} parent=1 // loop_footer
      %s17 = sadd.s32 1, %s13
    $region7: #{tpu_custom_call.1} parent=1 // loop_footer_branch
      %12 = sbr.rel target = $region3
    $region8: #{tpu_custom_call.1} parent=1 // loop_exit
      _
    %302 = vsyncpa [#allocation4], 1
    %s303 = scalar_lea.sflag [#allocation4], 1
    %304 = vsyncpa %s303, 1
    %305 = vsyncpa [#allocation5], 1
    %s306 = scalar_lea.sflag [#allocation5], 1
    %307 = vsyncpa %s306, 1

</llo_original>
